<compile_context>
chip_gen: v5e
topology: v5e:2x2
jax: 0.10.0
libtpu: 0.0.40
codegen_flags: <defaults>
</compile_context>

<pallas_src>
import functools

import jax
import jax.numpy as jnp
from jax.experimental import pallas as pl
from jax.experimental.pallas import tpu as pltpu

HIDDEN = 128
FFN = 256


def _round_up(n, m):
    return ((n + m - 1) // m) * m


def _round_down(n, m):
    return (n // m) * m


def _tensorcores_per_chip():
    """2 on v7x (a 'parallel' grid axis is sharded across its 2 TCs), else 1."""
    try:
        kind = jax.devices()[0].device_kind.lower()
    except Exception:
        return 1
    return 2 if "v7" in kind else 1


def _choose_token_tile(T, tm_max, two_core):
    """Token-tile size: multiple of 16, <= T (every block stays inside the
    array; only the last block is partial), as large as tm_max allows."""
    if T <= 16:
        return T                      # single exact block (block dims == array dims)
    if not two_core:
        # v5e / v6e: one TensorCore -> fewest, biggest steps.
        return min(tm_max, max(16, _round_down(T, 16)))
    # v7x: 2 TensorCores share the grid -> aim for an even number of steps >= 2
    # so both cores get balanced work.
    # TODO(synk): switch to pltpu.CORE_PARALLEL on v7x if "parallel" alone does
    # not shard the grid across both TensorCores.
    steps = max(2, pl.cdiv(T, tm_max))
    if steps % 2:
        steps += 1
    return max(16, _round_up(pl.cdiv(T, steps), 16))


def _swiglu_mlp_kernel(x_ref, w1_ref, w3_ref, w2_ref, o_ref):
    # x_ref : (tm, H) caller dtype      w1_ref / w3_ref : (H, F) bf16, resident
    # w2_ref: (F, H)  bf16, resident    o_ref           : (tm, H) out_dtype
    x = x_ref[...].astype(w1_ref.dtype)            # in-kernel bf16 cast (VPU, cheap)
    g = jnp.dot(x, w1_ref[...], preferred_element_type=jnp.float32)   # (tm, F)
    u = jnp.dot(x, w3_ref[...], preferred_element_type=jnp.float32)   # (tm, F)
    # SiLU(g) = g * sigmoid(g); exp + approx reciprocal both use the EUP slot,
    # keeping the VALU free.  Epilogue in f32 (v5e-safe; filler under the MXU).
    sig = pl.reciprocal(1.0 + jnp.exp(-g), approx=True)
    h = (g * sig * u).astype(w2_ref.dtype)                            # bf16
    y = jnp.dot(h, w2_ref[...], preferred_element_type=jnp.float32)
    o_ref[...] = y.astype(o_ref.dtype)


def pack_mixtral_mlp_weights(w1, w2, w3, dtype=jnp.bfloat16):
    """One-time weight prep (model-load time, NOT per forward call).

    w1, w3: (F, H) and w2: (H, F) in PyTorch Linear (out, in) layout.
    Returns w1_t, w3_t: (H, F) and w2_t: (F, H), cast to `dtype`.
    """
    return w1.T.astype(dtype), w3.T.astype(dtype), w2.T.astype(dtype)


@functools.partial(jax.jit, static_argnames=("tm_max", "out_dtype"))
def mixtral_block_sparse_top2_mlp_packed(x, w1_t, w3_t, w2_t, *,
                                         tm_max=2048, out_dtype=jnp.bfloat16):
    """x: (..., H). w1_t/w3_t: (H, F), w2_t: (F, H) from pack_mixtral_mlp_weights.

    Precision contract: MXU operands bf16, f32 accumulation, output `out_dtype`
    (default bf16 — the model/compute dtype).
    """
    *lead, H = x.shape
    F_ = w1_t.shape[1]
    assert w1_t.shape == (H, F_) and w3_t.shape == (H, F_) and w2_t.shape == (F_, H)
    x2d = x.reshape(-1, H)
    T = x2d.shape[0]

    tm = _choose_token_tile(T, tm_max, _tensorcores_per_chip() > 1)
    grid = (pl.cdiv(T, tm),)

    cost = pl.CostEstimate(
        flops=6 * T * H * F_,                                   # w1, w3, w2 matmuls
        transcendentals=T * F_,                                 # exp in SiLU
        bytes_accessed=(T * H * x2d.dtype.itemsize              # x reads
                        + T * H * jnp.dtype(out_dtype).itemsize  # out writes
                        + (w1_t.size + w3_t.size) * w1_t.dtype.itemsize
                        + w2_t.size * w2_t.dtype.itemsize),
    )

    out = pl.pallas_call(
        _swiglu_mlp_kernel,
        out_shape=jax.ShapeDtypeStruct((T, H), out_dtype),
        grid_spec=pltpu.PrefetchScalarGridSpec(
            num_scalar_prefetch=0,
            grid=grid,
            in_specs=[
                pl.BlockSpec((tm, H), lambda i: (i, 0)),   # x tile (last block partial)
                pl.BlockSpec((H, F_), lambda i: (0, 0)),   # w1^T resident (never re-DMA'd)
                pl.BlockSpec((H, F_), lambda i: (0, 0)),   # w3^T resident
                pl.BlockSpec((F_, H), lambda i: (0, 0)),   # w2^T resident
            ],
            out_specs=pl.BlockSpec((tm, H), lambda i: (i, 0)),
        ),
        compiler_params=pltpu.CompilerParams(
            dimension_semantics=("parallel",)),
        cost_estimate=cost,
    )(x2d, w1_t, w3_t, w2_t)

    return out.reshape(*lead, H)


def mixtral_block_sparse_top2_mlp(x, w1, w2, w3, *, tm_max=2048,
                                  out_dtype=jnp.bfloat16):
    """Convenience wrapper taking raw PyTorch-layout weights.

    Prefer packing once with pack_mixtral_mlp_weights() and calling
    mixtral_block_sparse_top2_mlp_packed() in a real model loop.
    """
    w1_t, w3_t, w2_t = pack_mixtral_mlp_weights(w1, w2, w3)
    return mixtral_block_sparse_top2_mlp_packed(
        x, w1_t, w3_t, w2_t, tm_max=tm_max, out_dtype=out_dtype)


def _reference_f32(x, w1, w2, w3):
    g = x @ w1.T
    g = g * jax.nn.sigmoid(g)          # SiLU
    u = x @ w3.T
    return (g * u) @ w2.T


if __name__ == "__main__":
    key = jax.random.PRNGKey(0)
    k_x, k1, k2, k3 = jax.random.split(key, 4)

    # Small shapes consistent with the module (hidden_states flattened to (-1, H)).
    T = 8
    x = jax.random.normal(k_x, (T, HIDDEN), dtype=jnp.float32)

    # Deterministic "Linear" weights, PyTorch (out_features, in_features) layout.
    bound1 = 1.0 / (HIDDEN ** 0.5)
    bound2 = 1.0 / (FFN ** 0.5)
    w1 = jax.random.uniform(k1, (FFN, HIDDEN), jnp.float32, -bound1, bound1)
    w2 = jax.random.uniform(k2, (HIDDEN, FFN), jnp.float32, -bound2, bound2)
    w3 = jax.random.uniform(k3, (FFN, HIDDEN), jnp.float32, -bound1, bound1)

    # Pack weights ONCE (model-load time), then call the packed kernel.
    w1_t, w3_t, w2_t = pack_mixtral_mlp_weights(w1, w2, w3)

    y = jax.block_until_ready(
        mixtral_block_sparse_top2_mlp_packed(x, w1_t, w3_t, w2_t))
    y_ref = _reference_f32(x, w1, w2, w3)
    assert y.shape == (T, HIDDEN) and y.dtype == jnp.bfloat16
    # bf16 MXU operands + bf16 output + approx reciprocal -> loose f32 compare.
    assert jnp.allclose(y.astype(jnp.float32), y_ref, atol=3e-2, rtol=3e-2), \
        "mismatch vs reference (T=8)"

    # Ragged / multi-step-grid path: T=200 -> partial last block, no pad copy.
    T2 = 200
    x2 = jax.random.normal(jax.random.PRNGKey(1), (T2, HIDDEN), dtype=jnp.float32)
    y2 = jax.block_until_ready(
        mixtral_block_sparse_top2_mlp_packed(x2, w1_t, w3_t, w2_t))
    y2_ref = _reference_f32(x2, w1, w2, w3)
    assert y2.shape == (T2, HIDDEN)
    assert jnp.allclose(y2.astype(jnp.float32), y2_ref, atol=3e-2, rtol=3e-2), \
        "mismatch vs reference (T=200)"

    print("KERNEL_OK")
</pallas_src>

<mosaic_0001>
module attributes {stable_mosaic.version = 11 : i64} {
  func.func @_swiglu_mlp_kernel(%arg0: i32, %arg1: memref<8x128xf32, #tpu.memory_space<vmem>>, %arg2: memref<128x256xbf16, #tpu.memory_space<vmem>>, %arg3: memref<128x256xbf16, #tpu.memory_space<vmem>>, %arg4: memref<256x128xbf16, #tpu.memory_space<vmem>>, %arg5: memref<8x128xbf16, #tpu.memory_space<vmem>>) attributes {dimension_semantics = [#tpu.dimension_semantics<parallel>], iteration_bounds = array<i64: 1>, scalar_prefetch = 0 : i64, scratch_operands = 0 : i64, tpu.core_type = #tpu.core_type<tc>, window_params = [{transform_indices = @transform_0, window_bounds = array<i64: 8, 128>}, {pipeline_mode = #tpu.pipeline_mode<synchronous>, transform_indices = @transform_1, window_bounds = array<i64: 128, 256>}, {pipeline_mode = #tpu.pipeline_mode<synchronous>, transform_indices = @transform_2, window_bounds = array<i64: 128, 256>}, {pipeline_mode = #tpu.pipeline_mode<synchronous>, transform_indices = @transform_3, window_bounds = array<i64: 256, 128>}, {transform_indices = @transform_4, window_bounds = array<i64: 8, 128>}]} {
    %c0 = arith.constant 0 : index
    %c0_0 = arith.constant 0 : index
    %0 = vector.load %arg1[%c0, %c0_0] : memref<8x128xf32, #tpu.memory_space<vmem>>, vector<8x128xf32>
    %1 = arith.truncf %0 : vector<8x128xf32> to vector<8x128xbf16>
    %c0_1 = arith.constant 0 : index
    %c0_2 = arith.constant 0 : index
    %2 = vector.load %arg2[%c0_1, %c0_2] : memref<128x256xbf16, #tpu.memory_space<vmem>>, vector<128x256xbf16>
    %cst = arith.constant dense<0.000000e+00> : vector<8x256xf32>
    %3 = tpu.matmul %1, %2, %cst {dimension_numbers = #tpu.dot_dimension_numbers<[1], [0], [0], [1], [0, 0, 1, 1], [], []>} : vector<8x128xbf16>, vector<128x256xbf16>, vector<8x256xf32> -> vector<8x256xf32>
    %c0_3 = arith.constant 0 : index
    %c0_4 = arith.constant 0 : index
    %4 = vector.load %arg3[%c0_3, %c0_4] : memref<128x256xbf16, #tpu.memory_space<vmem>>, vector<128x256xbf16>
    %cst_5 = arith.constant dense<0.000000e+00> : vector<8x256xf32>
    %5 = tpu.matmul %1, %4, %cst_5 {dimension_numbers = #tpu.dot_dimension_numbers<[1], [0], [0], [1], [0, 0, 1, 1], [], []>} : vector<8x128xbf16>, vector<128x256xbf16>, vector<8x256xf32> -> vector<8x256xf32>
    %cst_6 = arith.constant 0.000000e+00 : f32
    %6 = vector.broadcast %cst_6 : f32 to vector<8x256xf32>
    %7 = arith.subf %6, %3 : vector<8x256xf32>
    %8 = math.exp %7 : vector<8x256xf32>
    %cst_7 = arith.constant 1.000000e+00 : f32
    %9 = vector.broadcast %cst_7 : f32 to vector<8x256xf32>
    %10 = arith.addf %9, %8 : vector<8x256xf32>
    %11 = tpu.reciprocal %10 {approx = true} : vector<8x256xf32> -> vector<8x256xf32>
    %12 = arith.mulf %3, %11 : vector<8x256xf32>
    %13 = arith.mulf %12, %5 : vector<8x256xf32>
    %14 = arith.truncf %13 : vector<8x256xf32> to vector<8x256xbf16>
    %c0_8 = arith.constant 0 : index
    %c0_9 = arith.constant 0 : index
    %15 = vector.load %arg4[%c0_8, %c0_9] : memref<256x128xbf16, #tpu.memory_space<vmem>>, vector<256x128xbf16>
    %cst_10 = arith.constant dense<0.000000e+00> : vector<8x128xf32>
    %16 = tpu.matmul %14, %15, %cst_10 {dimension_numbers = #tpu.dot_dimension_numbers<[1], [0], [0], [1], [0, 0, 1, 1], [], []>} : vector<8x256xbf16>, vector<256x128xbf16>, vector<8x128xf32> -> vector<8x128xf32>
    %17 = arith.truncf %16 : vector<8x128xf32> to vector<8x128xbf16>
    %c0_11 = arith.constant 0 : index
    %c0_12 = arith.constant 0 : index
    %18 = vector.load %arg5[%c0_11, %c0_12] : memref<8x128xbf16, #tpu.memory_space<vmem>>, vector<8x128xbf16>
    tpu.vector_store %arg5[%c0_11, %c0_12], %17 {strides = array<i32>} : memref<8x128xbf16, #tpu.memory_space<vmem>>, vector<8x128xbf16>,
    return
  }
  func.func @transform_0(%arg0: i32) -> (i32, i32) {
    %c0_i32 = arith.constant 0 : i32
    %c0_i32_0 = arith.constant 0 : i32
    return %arg0, %c0_i32 : i32, i32
  }
  func.func @transform_1(%arg0: i32) -> (i32, i32) {
    %c0_i32 = arith.constant 0 : i32
    %c0_i32_0 = arith.constant 0 : i32
    %c0_i32_1 = arith.constant 0 : i32
    return %c0_i32, %c0_i32_0 : i32, i32
  }
  func.func @transform_2(%arg0: i32) -> (i32, i32) {
    %c0_i32 = arith.constant 0 : i32
    %c0_i32_0 = arith.constant 0 : i32
    %c0_i32_1 = arith.constant 0 : i32
    return %c0_i32, %c0_i32_0 : i32, i32
  }
  func.func @transform_3(%arg0: i32) -> (i32, i32) {
    %c0_i32 = arith.constant 0 : i32
    %c0_i32_0 = arith.constant 0 : i32
    %c0_i32_1 = arith.constant 0 : i32
    return %c0_i32, %c0_i32_0 : i32, i32
  }
  func.func @transform_4(%arg0: i32) -> (i32, i32) {
    %c0_i32 = arith.constant 0 : i32
    %c0_i32_0 = arith.constant 0 : i32
    return %arg0, %c0_i32 : i32, i32
  }
}

</mosaic_0001>

<llo_original>
// kernel: mixtral_block_sparse_top2_mlp_packed.1
$region0: #{mixtral_block_sparse_top2_mlp_packed.1}
  #allocation0 [shape = 'u32[]', space=smem, size = 0x4, offset = 0x4, fixed_abs, tag = 'smem constant byte address 0x4 - core index']
  #allocation1 [shape = 'u32[72,128]{1,0:T(1,128)}', space=vmem, size = 0x9000, scoped, tag = 'internal scratch']
  %s0 = inlined_call_operand.hbm [shape: f32[8,128], index: 0, kind: input, shape index: {}]
  %s1 = inlined_call_operand.hbm [shape: bf16[128,256], index: 1, kind: input, shape index: {}]
  %s2 = inlined_call_operand.hbm [shape: bf16[128,256], index: 2, kind: input, shape index: {}]
  %s3 = inlined_call_operand.hbm [shape: bf16[256,128], index: 3, kind: input, shape index: {}]
  %s4 = inlined_call_operand.hbm [shape: bf16[8,128], index: 4, kind: output, shape index: {}]
  %s5 = sld [smem:[#allocation0]]
  $region42: #{mixtral_block_sparse_top2_mlp_packed.1} parent=0
    _
  %s7 = ssub.s32 1, %s5
  %s8 = scalar_select 0, %s7, %s5
  $region1: #{mixtral_block_sparse_top2_mlp_packed.1} parent=0
    #allocation2 [shape = 'u8[4096]{0}', space=vmem, size = 0x1000, scoped, tag = 'input window, operand 0, single buffered']
    #allocation3 [shape = 's32[1]{0}', space=sflag, size = 0x4, scoped, tag = 'scoped memory for mixtral_block_sparse_top2_mlp_packed.1']
    #allocation4 [shape = 's32[1]{0}', space=sflag, size = 0x4, scoped, tag = 'scoped memory for mixtral_block_sparse_top2_mlp_packed.1']
    #allocation5 [shape = 'u8[65536]{0}', space=vmem, size = 0x10000, scoped, tag = 'input window, operand 1, single buffered']
    #allocation6 [shape = 's32[1]{0}', space=sflag, size = 0x4, scoped, tag = 'scoped memory for mixtral_block_sparse_top2_mlp_packed.1']
    #allocation7 [shape = 'u8[65536]{0}', space=vmem, size = 0x10000, scoped, tag = 'input window, operand 2, single buffered']
    #allocation8 [shape = 'u8[65536]{0}', space=vmem, size = 0x10000, scoped, tag = 'input window, operand 3, single buffered']
    #allocation9 [shape = 's32[1]{0}', space=sflag, size = 0x4, scoped, tag = 'scoped memory for mixtral_block_sparse_top2_mlp_packed.1']
    #allocation10 [shape = 'u8[2048]{0}', space=vmem, size = 0x800, scoped, tag = 'output window, operand 0, single buffered']
    %9 = vsyncpa [#allocation3], 0
    %10 = vsyncpa [#allocation6], 0
    %11 = vsyncpa [#allocation9], 0
    %12 = vsyncpa [#allocation4], 0
    // Predicated region
    $region2: #{mixtral_block_sparse_top2_mlp_packed.1} parent=1 // pred_check
      _
    $region3: #{mixtral_block_sparse_top2_mlp_packed.1} parent=1 // pred_check_branch
      %14 = sbr.rel (0) target = $region5
    $region4: #{mixtral_block_sparse_top2_mlp_packed.1} parent=1 // pred_region
      %16 = vsyncadd [#allocation3], 0
      %s18 = sshll.u32 %s0, 4
      %s19 = int_to_ptr.hbm [resolvable:$true] %s18
      %s20 = sshll.u32 [#allocation2], 4
      %s21 = int_to_ptr.vmem [resolvable:$true] %s20
      %23 = dma.hbm_to_vmem [thread:$0]  %s19, 128, %s21, [#allocation3]
    $region5: #{mixtral_block_sparse_top2_mlp_packed.1} parent=1 // pred_fallthru
      _
    // Predicated region
    $region6: #{mixtral_block_sparse_top2_mlp_packed.1} parent=1 // pred_check
      _
    $region7: #{mixtral_block_sparse_top2_mlp_packed.1} parent=1 // pred_check_branch
      %25 = sbr.rel (0) target = $region9
    $region8: #{mixtral_block_sparse_top2_mlp_packed.1} parent=1 // pred_region
      %27 = vsyncadd [#allocation6], 0
      %s28 = sshll.u32 %s1, 4
      %s29 = int_to_ptr.hbm [resolvable:$true] %s28
      %s30 = sshll.u32 [#allocation5], 4
      %s31 = int_to_ptr.vmem [resolvable:$true] %s30
      %36 = dma.hbm_to_vmem [thread:$0]  %s29, 2048, %s31, [#allocation6], 128, 128, 8
    $region9: #{mixtral_block_sparse_top2_mlp_packed.1} parent=1 // pred_fallthru
      _
    // Predicated region
    $region10: #{mixtral_block_sparse_top2_mlp_packed.1} parent=1 // pred_check
      _
    $region11: #{mixtral_block_sparse_top2_mlp_packed.1} parent=1 // pred_check_branch
      %38 = sbr.rel (0) target = $region13
    $region12: #{mixtral_block_sparse_top2_mlp_packed.1} parent=1 // pred_region
      %40 = vsyncadd [#allocation6], 0
      %s41 = sshll.u32 %s2, 4
      %s42 = int_to_ptr.hbm [resolvable:$true] %s41
      %s43 = sshll.u32 [#allocation7], 4
      %s44 = int_to_ptr.vmem [resolvable:$true] %s43
      %49 = dma.hbm_to_vmem [thread:$0]  %s42, 2048, %s44, [#allocation6], 128, 128, 8
    $region13: #{mixtral_block_sparse_top2_mlp_packed.1} parent=1 // pred_fallthru
      _
    // Predicated region
    $region14: #{mixtral_block_sparse_top2_mlp_packed.1} parent=1 // pred_check
      _
    $region15: #{mixtral_block_sparse_top2_mlp_packed.1} parent=1 // pred_check_branch
      %51 = sbr.rel (0) target = $region17
    $region16: #{mixtral_block_sparse_top2_mlp_packed.1} parent=1 // pred_region
      %53 = vsyncadd [#allocation9], 0
      %s54 = sshll.u32 %s3, 4
      %s55 = int_to_ptr.hbm [resolvable:$true] %s54
      %s56 = sshll.u32 [#allocation8], 4
      %s57 = int_to_ptr.vmem [resolvable:$true] %s56
      %62 = dma.hbm_to_vmem [thread:$0]  %s55, 2048, %s57, [#allocation9], 64, 64, 4
    $region17: #{mixtral_block_sparse_top2_mlp_packed.1} parent=1 // pred_fallthru
      _
    // Predicated region
    $region18: #{mixtral_block_sparse_top2_mlp_packed.1} parent=1 // pred_check
      _
    $region19: #{mixtral_block_sparse_top2_mlp_packed.1} parent=1 // pred_check_branch
      %64 = sbr.rel (0) target = $region21
    $region20: #{mixtral_block_sparse_top2_mlp_packed.1} parent=1 // pred_region
      %66 = dma.done [#allocation3], 128
    $region21: #{mixtral_block_sparse_top2_mlp_packed.1} parent=1 // pred_fallthru
      _
    // Predicated region
    $region22: #{mixtral_block_sparse_top2_mlp_packed.1} parent=1 // pred_check
      _
    $region23: #{mixtral_block_sparse_top2_mlp_packed.1} parent=1 // pred_check_branch
      %68 = sbr.rel (0) target = $region25
    $region24: #{mixtral_block_sparse_top2_mlp_packed.1} parent=1 // pred_region
      %70 = dma.done [#allocation6], 2048
    $region25: #{mixtral_block_sparse_top2_mlp_packed.1} parent=1 // pred_fallthru
      _
    // Predicated region
    $region26: #{mixtral_block_sparse_top2_mlp_packed.1} parent=1 // pred_check
      _
    $region27: #{mixtral_block_sparse_top2_mlp_packed.1} parent=1 // pred_check_branch
      %72 = sbr.rel (0) target = $region29
    $region28: #{mixtral_block_sparse_top2_mlp_packed.1} parent=1 // pred_region
      %74 = dma.done [#allocation6], 2048
    $region29: #{mixtral_block_sparse_top2_mlp_packed.1} parent=1 // pred_fallthru
      _
    // Predicated region
    $region30: #{mixtral_block_sparse_top2_mlp_packed.1} parent=1 // pred_check
      _
    $region31: #{mixtral_block_sparse_top2_mlp_packed.1} parent=1 // pred_check_branch
      %76 = sbr.rel (0) target = $region33
    $region32: #{mixtral_block_sparse_top2_mlp_packed.1} parent=1 // pred_region
      %78 = dma.done [#allocation9], 2048
    $region33: #{mixtral_block_sparse_top2_mlp_packed.1} parent=1 // pred_fallthru
      _
    %v79 = vld [vmem:[#allocation2] sm:$0xff]
    %v80 = vpack.c.bf16 %v79, %v79
    %v81 = vld [vmem:[#allocation5] sm:$0xff]
    %v82 = vld [vmem:[#allocation5 + $0x8] sm:$0xff]
    %v83 = vld [vmem:[#allocation5 + $0x10] sm:$0xff]
    %v84 = vld [vmem:[#allocation5 + $0x18] sm:$0xff]
    %v85 = vld [vmem:[#allocation5 + $0x20] sm:$0xff]
    %v86 = vld [vmem:[#allocation5 + $0x28] sm:$0xff]
    %v87 = vld [vmem:[#allocation5 + $0x30] sm:$0xff]
    %v88 = vld [vmem:[#allocation5 + $0x38] sm:$0xff]
    %v89 = vld [vmem:[#allocation5 + $0x40] sm:$0xff]
    %v90 = vld [vmem:[#allocation5 + $0x48] sm:$0xff]
    %v91 = vld [vmem:[#allocation5 + $0x50] sm:$0xff]
    %v92 = vld [vmem:[#allocation5 + $0x58] sm:$0xff]
    %v93 = vld [vmem:[#allocation5 + $0x60] sm:$0xff]
    %v94 = vld [vmem:[#allocation5 + $0x68] sm:$0xff]
    %v95 = vld [vmem:[#allocation5 + $0x70] sm:$0xff]
    %v96 = vld [vmem:[#allocation5 + $0x78] sm:$0xff]
    %v113 = vunpack.c.l.b16 %v81
    %v114 = vunpack.c.h.b16 %v81
    %v115 = vunpack.c.l.b16 %v82
    %v116 = vunpack.c.h.b16 %v82
    %v117 = vunpack.c.l.b16 %v83
    %v118 = vunpack.c.h.b16 %v83
    %v119 = vunpack.c.l.b16 %v84
    %v120 = vunpack.c.h.b16 %v84
    %v121 = vunpack.c.l.b16 %v85
    %v122 = vunpack.c.h.b16 %v85
    %v123 = vunpack.c.l.b16 %v86
    %v124 = vunpack.c.h.b16 %v86
    %v125 = vunpack.c.l.b16 %v87
    %v126 = vunpack.c.h.b16 %v87
    %v127 = vunpack.c.l.b16 %v88
    %v128 = vunpack.c.h.b16 %v88
    %v129 = vunpack.c.l.b16 %v89
    %v130 = vunpack.c.h.b16 %v89
    %v131 = vunpack.c.l.b16 %v90
    %v132 = vunpack.c.h.b16 %v90
    %v133 = vunpack.c.l.b16 %v91
    %v134 = vunpack.c.h.b16 %v91
    %v135 = vunpack.c.l.b16 %v92
    %v136 = vunpack.c.h.b16 %v92
    %v137 = vunpack.c.l.b16 %v93
    %v138 = vunpack.c.h.b16 %v93
    %v139 = vunpack.c.l.b16 %v94
    %v140 = vunpack.c.h.b16 %v94
    %v141 = vunpack.c.l.b16 %v95
    %v142 = vunpack.c.h.b16 %v95
    %v143 = vunpack.c.l.b16 %v96
    %v144 = vunpack.c.h.b16 %v96
    %v145 = vpack.c.b16 %v115, %v113
    %v146 = vpack.c.b16 %v116, %v114
    %v147 = vpack.c.b16 %v119, %v117
    %v148 = vpack.c.b16 %v120, %v118
    %v149 = vpack.c.b16 %v123, %v121
    %v150 = vpack.c.b16 %v124, %v122
    %v151 = vpack.c.b16 %v127, %v125
    %v152 = vpack.c.b16 %v128, %v126
    %v153 = vpack.c.b16 %v131, %v129
    %v154 = vpack.c.b16 %v132, %v130
    %v155 = vpack.c.b16 %v135, %v133
    %v156 = vpack.c.b16 %v136, %v134
    %v157 = vpack.c.b16 %v139, %v137
    %v158 = vpack.c.b16 %v140, %v138
    %v159 = vpack.c.b16 %v143, %v141
    %v160 = vpack.c.b16 %v144, %v142
    %177 = vmatpush.bf16.msra.mxu0 %v159
    %178 = vmatpush.bf16.msra.mxu0 %v157
    %179 = vmatpush.bf16.msra.mxu0 %v155
    %180 = vmatpush.bf16.msra.mxu0 %v153
    %181 = vmatpush.bf16.msra.mxu0 %v151
    %182 = vmatpush.bf16.msra.mxu0 %v149
    %183 = vmatpush.bf16.msra.mxu0 %v147
    %184 = vmatpush.bf16.msra.mxu0 %v145
    %185 = vmatmul.bf16.gmra.mxu0 %v80
    %v186 = vpop.f32.mrf.mxu0
    %v187 = vadd.f32 0.0, %v186
    %v188 = vpop.f32.mrf.mxu0
    %189 = vdwg.mxu0
    %190 = vmatpush.bf16.msra.mxu0 %v160
    %191 = vmatpush.bf16.msra.mxu0 %v158
    %192 = vmatpush.bf16.msra.mxu0 %v156
    %193 = vmatpush.bf16.msra.mxu0 %v154
    %194 = vmatpush.bf16.msra.mxu0 %v152
    %195 = vmatpush.bf16.msra.mxu0 %v150
    %196 = vmatpush.bf16.msra.mxu0 %v148
    %197 = vmatpush.bf16.msra.mxu0 %v146
    %198 = vmatmul.bf16.gmra.mxu0 %v80
    %v199 = vpop.f32.mrf.mxu0
    %v200 = vadd.f32 0.0, %v199
    %v201 = vpop.f32.mrf.mxu0
    %202 = vdwg.mxu0
    %v203 = vld [vmem:[#allocation7] sm:$0xff]
    %v204 = vld [vmem:[#allocation7 + $0x8] sm:$0xff]
    %v205 = vld [vmem:[#allocation7 + $0x10] sm:$0xff]
    %v206 = vld [vmem:[#allocation7 + $0x18] sm:$0xff]
    %v207 = vld [vmem:[#allocation7 + $0x20] sm:$0xff]
    %v208 = vld [vmem:[#allocation7 + $0x28] sm:$0xff]
    %v209 = vld [vmem:[#allocation7 + $0x30] sm:$0xff]
    %v210 = vld [vmem:[#allocation7 + $0x38] sm:$0xff]
    %v211 = vld [vmem:[#allocation7 + $0x40] sm:$0xff]
    %v212 = vld [vmem:[#allocation7 + $0x48] sm:$0xff]
    %v213 = vld [vmem:[#allocation7 + $0x50] sm:$0xff]
    %v214 = vld [vmem:[#allocation7 + $0x58] sm:$0xff]
    %v215 = vld [vmem:[#allocation7 + $0x60] sm:$0xff]
    %v216 = vld [vmem:[#allocation7 + $0x68] sm:$0xff]
    %v217 = vld [vmem:[#allocation7 + $0x70] sm:$0xff]
    %v218 = vld [vmem:[#allocation7 + $0x78] sm:$0xff]
    %v235 = vunpack.c.l.b16 %v203
    %v236 = vunpack.c.h.b16 %v203
    %v237 = vunpack.c.l.b16 %v204
    %v238 = vunpack.c.h.b16 %v204
    %v239 = vunpack.c.l.b16 %v205
    %v240 = vunpack.c.h.b16 %v205
    %v241 = vunpack.c.l.b16 %v206
    %v242 = vunpack.c.h.b16 %v206
    %v243 = vunpack.c.l.b16 %v207
    %v244 = vunpack.c.h.b16 %v207
    %v245 = vunpack.c.l.b16 %v208
    %v246 = vunpack.c.h.b16 %v208
    %v247 = vunpack.c.l.b16 %v209
    %v248 = vunpack.c.h.b16 %v209
    %v249 = vunpack.c.l.b16 %v210
    %v250 = vunpack.c.h.b16 %v210
    %v251 = vunpack.c.l.b16 %v211
    %v252 = vunpack.c.h.b16 %v211
    %v253 = vunpack.c.l.b16 %v212
    %v254 = vunpack.c.h.b16 %v212
    %v255 = vunpack.c.l.b16 %v213
    %v256 = vunpack.c.h.b16 %v213
    %v257 = vunpack.c.l.b16 %v214
    %v258 = vunpack.c.h.b16 %v214
    %v259 = vunpack.c.l.b16 %v215
    %v260 = vunpack.c.h.b16 %v215
    %v261 = vunpack.c.l.b16 %v216
    %v262 = vunpack.c.h.b16 %v216
    %v263 = vunpack.c.l.b16 %v217
    %v264 = vunpack.c.h.b16 %v217
    %v265 = vunpack.c.l.b16 %v218
    %v266 = vunpack.c.h.b16 %v218
    %v267 = vpack.c.b16 %v237, %v235
    %v268 = vpack.c.b16 %v238, %v236
    %v269 = vpack.c.b16 %v241, %v239
    %v270 = vpack.c.b16 %v242, %v240
    %v271 = vpack.c.b16 %v245, %v243
    %v272 = vpack.c.b16 %v246, %v244
    %v273 = vpack.c.b16 %v249, %v247
    %v274 = vpack.c.b16 %v250, %v248
    %v275 = vpack.c.b16 %v253, %v251
    %v276 = vpack.c.b16 %v254, %v252
    %v277 = vpack.c.b16 %v257, %v255
    %v278 = vpack.c.b16 %v258, %v256
    %v279 = vpack.c.b16 %v261, %v259
    %v280 = vpack.c.b16 %v262, %v260
    %v281 = vpack.c.b16 %v265, %v263
    %v282 = vpack.c.b16 %v266, %v264
    %299 = vmatpush.bf16.msra.mxu0 %v281
    %300 = vmatpush.bf16.msra.mxu0 %v279
    %301 = vmatpush.bf16.msra.mxu0 %v277
    %302 = vmatpush.bf16.msra.mxu0 %v275
    %303 = vmatpush.bf16.msra.mxu0 %v273
    %304 = vmatpush.bf16.msra.mxu0 %v271
    %305 = vmatpush.bf16.msra.mxu0 %v269
    %306 = vmatpush.bf16.msra.mxu0 %v267
    %307 = vmatmul.bf16.gmra.mxu0 %v80
    %v308 = vpop.f32.mrf.mxu0
    %v309 = vadd.f32 0.0, %v308
    %v310 = vpop.f32.mrf.mxu0
    %311 = vdwg.mxu0
    %312 = vmatpush.bf16.msra.mxu0 %v282
    %313 = vmatpush.bf16.msra.mxu0 %v280
    %314 = vmatpush.bf16.msra.mxu0 %v278
    %315 = vmatpush.bf16.msra.mxu0 %v276
    %316 = vmatpush.bf16.msra.mxu0 %v274
    %317 = vmatpush.bf16.msra.mxu0 %v272
    %318 = vmatpush.bf16.msra.mxu0 %v270
    %319 = vmatpush.bf16.msra.mxu0 %v268
    %320 = vmatmul.bf16.gmra.mxu0 %v80
    %v321 = vpop.f32.mrf.mxu0
    %v322 = vadd.f32 0.0, %v321
    %v323 = vpop.f32.mrf.mxu0
    %324 = vdwg.mxu0
    %v325 = vsub.f32 0.0, %v187
    %v326 = vsub.f32 0.0, %v200
    %v327 = vmul.f32 %v325, 1.442695
    %v328 = vpow.pop %v327
    %v329 = vmul.f32 %v326, 1.442695
    %v330 = vpow.pop %v329
    %v331 = vadd.f32 %v328, 1.0
    %v332 = vadd.f32 %v330, 1.0
    %v333 = vrcp.pop %v331
    %v334 = vrcp.pop %v332
    %v335 = vmul.f32 %v187, %v333
    %v336 = vmul.f32 %v200, %v334
    %v337 = vmul.f32 %v335, %v309
    %v338 = vmul.f32 %v336, %v322
    %v339 = vpack.c.bf16 %v337, %v337
    %v340 = vpack.c.bf16 %v338, %v338
    %v341 = vld [vmem:[#allocation8] sm:$0xf]
    %v342 = vld [vmem:[#allocation8 + $0x4] sm:$0xf]
    %v343 = vld [vmem:[#allocation8 + $0x8] sm:$0xf]
    %v344 = vld [vmem:[#allocation8 + $0xc] sm:$0xf]
    %v345 = vld [vmem:[#allocation8 + $0x10] sm:$0xf]
    %v346 = vld [vmem:[#allocation8 + $0x14] sm:$0xf]
    %v347 = vld [vmem:[#allocation8 + $0x18] sm:$0xf]
    %v348 = vld [vmem:[#allocation8 + $0x1c] sm:$0xf]
    %v349 = vld [vmem:[#allocation8 + $0x20] sm:$0xf]
    %v350 = vld [vmem:[#allocation8 + $0x24] sm:$0xf]
    %v351 = vld [vmem:[#allocation8 + $0x28] sm:$0xf]
    %v352 = vld [vmem:[#allocation8 + $0x2c] sm:$0xf]
    %v353 = vld [vmem:[#allocation8 + $0x30] sm:$0xf]
    %v354 = vld [vmem:[#allocation8 + $0x34] sm:$0xf]
    %v355 = vld [vmem:[#allocation8 + $0x38] sm:$0xf]
    %v356 = vld [vmem:[#allocation8 + $0x3c] sm:$0xf]
    %v357 = vld [vmem:[#allocation8 + $0x40] sm:$0xf]
    %v358 = vld [vmem:[#allocation8 + $0x44] sm:$0xf]
    %v359 = vld [vmem:[#allocation8 + $0x48] sm:$0xf]
    %v360 = vld [vmem:[#allocation8 + $0x4c] sm:$0xf]
    %v361 = vld [vmem:[#allocation8 + $0x50] sm:$0xf]
    %v362 = vld [vmem:[#allocation8 + $0x54] sm:$0xf]
    %v363 = vld [vmem:[#allocation8 + $0x58] sm:$0xf]
    %v364 = vld [vmem:[#allocation8 + $0x5c] sm:$0xf]
    %v365 = vld [vmem:[#allocation8 + $0x60] sm:$0xf]
    %v366 = vld [vmem:[#allocation8 + $0x64] sm:$0xf]
    %v367 = vld [vmem:[#allocation8 + $0x68] sm:$0xf]
    %v368 = vld [vmem:[#allocation8 + $0x6c] sm:$0xf]
    %v369 = vld [vmem:[#allocation8 + $0x70] sm:$0xf]
    %v370 = vld [vmem:[#allocation8 + $0x74] sm:$0xf]
    %v371 = vld [vmem:[#allocation8 + $0x78] sm:$0xf]
    %v372 = vld [vmem:[#allocation8 + $0x7c] sm:$0xf]
    %v405 = vunpack.c.l.b16 %v341
    %v406 = vunpack.c.l.b16 %v342
    %v407 = vunpack.c.l.b16 %v343
    %v408 = vunpack.c.l.b16 %v344
    %v409 = vunpack.c.l.b16 %v345
    %v410 = vunpack.c.l.b16 %v346
    %v411 = vunpack.c.l.b16 %v347
    %v412 = vunpack.c.l.b16 %v348
    %v413 = vunpack.c.l.b16 %v349
    %v414 = vunpack.c.l.b16 %v350
    %v415 = vunpack.c.l.b16 %v351
    %v416 = vunpack.c.l.b16 %v352
    %v417 = vunpack.c.l.b16 %v353
    %v418 = vunpack.c.l.b16 %v354
    %v419 = vunpack.c.l.b16 %v355
    %v420 = vunpack.c.l.b16 %v356
    %v421 = vunpack.c.l.b16 %v357
    %v422 = vunpack.c.l.b16 %v358
    %v423 = vunpack.c.l.b16 %v359
    %v424 = vunpack.c.l.b16 %v360
    %v425 = vunpack.c.l.b16 %v361
    %v426 = vunpack.c.l.b16 %v362
    %v427 = vunpack.c.l.b16 %v363
    %v428 = vunpack.c.l.b16 %v364
    %v429 = vunpack.c.l.b16 %v365
    %v430 = vunpack.c.l.b16 %v366
    %v431 = vunpack.c.l.b16 %v367
    %v432 = vunpack.c.l.b16 %v368
    %v433 = vunpack.c.l.b16 %v369
    %v434 = vunpack.c.l.b16 %v370
    %v435 = vunpack.c.l.b16 %v371
    %v436 = vunpack.c.l.b16 %v372
    %v437 = vpack.c.b16 %v406, %v405
    %v438 = vpack.c.b16 %v408, %v407
    %v439 = vpack.c.b16 %v410, %v409
    %v440 = vpack.c.b16 %v412, %v411
    %v441 = vpack.c.b16 %v414, %v413
    %v442 = vpack.c.b16 %v416, %v415
    %v443 = vpack.c.b16 %v418, %v417
    %v444 = vpack.c.b16 %v420, %v419
    %v445 = vpack.c.b16 %v422, %v421
    %v446 = vpack.c.b16 %v424, %v423
    %v447 = vpack.c.b16 %v426, %v425
    %v448 = vpack.c.b16 %v428, %v427
    %v449 = vpack.c.b16 %v430, %v429
    %v450 = vpack.c.b16 %v432, %v431
    %v451 = vpack.c.b16 %v434, %v433
    %v452 = vpack.c.b16 %v436, %v435
    %469 = vmatpush.bf16.msra.mxu0 %v444
    %470 = vmatpush.bf16.msra.mxu0 %v443
    %471 = vmatpush.bf16.msra.mxu0 %v442
    %472 = vmatpush.bf16.msra.mxu0 %v441
    %473 = vmatpush.bf16.msra.mxu0 %v440
    %474 = vmatpush.bf16.msra.mxu0 %v439
    %475 = vmatpush.bf16.msra.mxu0 %v438
    %476 = vmatpush.bf16.msra.mxu0 %v437
    %477 = vmatmul.bf16.gmra.mxu0 %v339
    %v478 = vpop.f32.mrf.mxu0
    %v479 = vadd.f32 0.0, %v478
    %v480 = vpop.f32.mrf.mxu0
    %481 = vdwg.mxu0
    %482 = vmatpush.bf16.msra.mxu0 %v452
    %483 = vmatpush.bf16.msra.mxu0 %v451
    %484 = vmatpush.bf16.msra.mxu0 %v450
    %485 = vmatpush.bf16.msra.mxu0 %v449
    %486 = vmatpush.bf16.msra.mxu0 %v448
    %487 = vmatpush.bf16.msra.mxu0 %v447
    %488 = vmatpush.bf16.msra.mxu0 %v446
    %489 = vmatpush.bf16.msra.mxu0 %v445
    %490 = vmatmul.bf16.gmra.mxu0 %v340
    %v491 = vpop.f32.mrf.mxu0
    %v492 = vadd.f32 %v479, %v491
    %v493 = vpop.f32.mrf.mxu0
    %494 = vdwg.mxu0
    %v495 = vpack.c.bf16 %v492, %v492
    %496 = vst [vmem:[#allocation10] sm:$0xf] %v495
    // Predicated region
    $region34: #{mixtral_block_sparse_top2_mlp_packed.1} parent=1 // pred_check
      _
    $region35: #{mixtral_block_sparse_top2_mlp_packed.1} parent=1 // pred_check_branch
      %498 = sbr.rel (0) target = $region37
    $region36: #{mixtral_block_sparse_top2_mlp_packed.1} parent=1 // pred_region
      %500 = vsyncadd [#allocation4], 0
      %s502 = sshll.u32 [#allocation10], 4
      %s503 = int_to_ptr.vmem [resolvable:$true] %s502
      %s504 = sshll.u32 %s4, 4
      %s505 = int_to_ptr.hbm [resolvable:$true] %s504
      %507 = dma.vmem_to_hbm [thread:$0]  %s503, 64, %s505, [#allocation4]
    $region37: #{mixtral_block_sparse_top2_mlp_packed.1} parent=1 // pred_fallthru
      _
    // Predicated region
    $region38: #{mixtral_block_sparse_top2_mlp_packed.1} parent=1 // pred_check
      _
    $region39: #{mixtral_block_sparse_top2_mlp_packed.1} parent=1 // pred_check_branch
      %509 = sbr.rel (0) target = $region41
    $region40: #{mixtral_block_sparse_top2_mlp_packed.1} parent=1 // pred_region
      %511 = dma.done [#allocation4], 64
    $region41: #{mixtral_block_sparse_top2_mlp_packed.1} parent=1 // pred_fallthru
      _
    %512 = vsyncpa [#allocation3], 1
    %513 = vsyncpa [#allocation6], 1
    %514 = vsyncpa [#allocation9], 1
    %515 = vsyncpa [#allocation4], 1

</llo_original>
